<compile_context>
chip_gen: v6e
topology: v6e:2x2x1
jax: 0.10.0
libtpu: 0.0.40
codegen_flags: <defaults>
</compile_context>

<pallas_src>
import functools

import jax
import jax.numpy as jnp
import numpy as np
from jax.experimental import pallas as pl
from jax.experimental.pallas import tpu as pltpu


def _linear_attention_kernel(x_ref, wqkv_ref, wout_ref, bout_ref, o_ref,
                             *, dim_head):
    dh = dim_head
    h = pl.program_id(1)

    x = x_ref[0]                                     # (C, N)      bf16
    w_h = wqkv_ref[0]                                # (3*dh, C)   bf16, rows = [q|k|v]

    # Per-head 1x1-conv qkv projection on the MXU (bf16 in, f32 accumulate).
    qkv = jnp.dot(w_h, x, preferred_element_type=jnp.float32)      # (3*dh, N) f32
    q = qkv[0 * dh:1 * dh, :]                        # (dh, N)
    k = qkv[1 * dh:2 * dh, :]
    v = qkv[2 * dh:3 * dh, :]

    # Unnormalized, numerically-stable softmax weights (f32 VPU/EUP work).
    m = jnp.max(k, axis=-1, keepdims=True)           # (dh, 1)
    p = jnp.exp(k - m)                               # (dh, N), in (0, 1]
    denom = jnp.sum(p, axis=-1, keepdims=True)       # (dh, 1)

    # context_un[d, e] = sum_n p[d, n] * v[e, n]  -- contract the last dims of
    # both operands so no (N, dh) transpose of v is ever materialized.
    context_un = jax.lax.dot_general(
        p.astype(jnp.bfloat16), v.astype(jnp.bfloat16),
        dimension_numbers=(((1,), (1,)), ((), ())),
        preferred_element_type=jnp.float32)          # (dh, dh)

    # Normalize AFTER the contraction: scale dh*dh values, not dh*N.
    context = context_un * pl.reciprocal(denom, approx=True)       # (dh, dh)

    # Fused output projection:
    #   y_h = w_out_h @ (context^T @ q) = (w_out_h @ context^T) @ q
    w_fused = jax.lax.dot_general(                    # (C, dh)  -- tiny matmul
        wout_ref[0], context.astype(jnp.bfloat16),
        dimension_numbers=(((1,), (1,)), ((), ())),
        preferred_element_type=jnp.float32)
    y_h = jnp.dot(w_fused.astype(jnp.bfloat16), q.astype(jnp.bfloat16),
                  preferred_element_type=jnp.float32)               # (C, N) f32

    # Accumulate heads directly into the resident f32 output block; seed it
    # with the output-conv bias on the first head.
    @pl.when(h == 0)
    def _():
        o_ref[0] = jnp.broadcast_to(bout_ref[...],
                                    o_ref.shape[1:]).astype(o_ref.dtype)

    o_ref[0] += y_h.astype(o_ref.dtype)


def linear_attention(x, w_qkv, w_out, b_out, *, heads, dim_head):
    """x: (B, C, H, W) float32. w_qkv: (3*heads*dim_head, C),
    w_out: (C, heads*dim_head), b_out: (C,). Returns (B, C, H, W) float32."""
    B, C, H, W = x.shape
    N = H * W
    dh = dim_head
    hid = heads * dh
    assert w_qkv.shape == (3 * hid, C)
    assert w_out.shape == (C, hid)
    assert b_out.shape == (C,)

    # bf16 MXU operands; f32 accumulation happens inside the kernel.
    x_cn = x.reshape(B, C, N).astype(jnp.bfloat16)
    # Regroup qkv weights so each head's [q; k; v] rows form one contiguous block.
    w_qkv_h = (w_qkv.reshape(3, heads, dh, C)
                     .transpose(1, 0, 2, 3)
                     .reshape(heads, 3 * dh, C)
                     .astype(jnp.bfloat16))
    # Per-head slice of the output 1x1-conv weight.
    w_out_h = (w_out.reshape(C, heads, dh)
                    .transpose(1, 0, 2)
                    .astype(jnp.bfloat16))
    b_out_2d = b_out.reshape(C, 1).astype(jnp.float32)

    kernel = functools.partial(_linear_attention_kernel, dim_head=dh)

    # TODO(synk): for LDM-scale shapes on v7x (64 MiB VMEM), add an N-tiling
    # grid axis with a two-pass / online softmax so the (C, N) x/out blocks
    # can also be tiled along the spatial axis.
    out = pl.pallas_call(
        kernel,
        out_shape=jax.ShapeDtypeStruct((B, C, N), jnp.float32),
        grid_spec=pltpu.PrefetchScalarGridSpec(
            num_scalar_prefetch=0,
            grid=(B, heads),
            in_specs=[
                pl.BlockSpec((1, C, N), lambda b, h: (b, 0, 0)),       # x (stays resident across heads)
                pl.BlockSpec((1, 3 * dh, C), lambda b, h: (h, 0, 0)),  # per-head qkv weights
                pl.BlockSpec((1, C, dh), lambda b, h: (h, 0, 0)),      # per-head out-proj weights
                pl.BlockSpec((C, 1), lambda b, h: (0, 0)),             # out-proj bias
            ],
            out_specs=pl.BlockSpec((1, C, N), lambda b, h: (b, 0, 0)),
        ),
        compiler_params=pltpu.CompilerParams(
            dimension_semantics=("parallel", "arbitrary"),
            vmem_limit_bytes=48 * 1024 * 1024,
        ),
    )(x_cn, w_qkv_h, w_out_h, b_out_2d)

    return out.reshape(B, C, H, W).astype(x.dtype)


def ref_linear_attention(x, w_qkv, w_out, b_out, *, heads, dim_head):
    """Pure-JAX f32 reference mirroring the PyTorch forward."""
    B, C, H, W = x.shape
    N = H * W
    hid = heads * dim_head
    xf = x.reshape(B, C, N)
    qkv = jnp.einsum('oc,bcn->bon', w_qkv, xf)
    q = qkv[:, 0 * hid:1 * hid].reshape(B, heads, dim_head, N)
    k = qkv[:, 1 * hid:2 * hid].reshape(B, heads, dim_head, N)
    v = qkv[:, 2 * hid:3 * hid].reshape(B, heads, dim_head, N)
    k = jax.nn.softmax(k, axis=-1)
    context = jnp.einsum('bhdn,bhen->bhde', k, v)
    out = jnp.einsum('bhde,bhdn->bhen', context, q)
    out = out.reshape(B, hid, N)
    y = jnp.einsum('oc,bcn->bon', w_out, out) + b_out.reshape(1, -1, 1)
    return y.reshape(B, C, H, W)


if __name__ == "__main__":
    # Small shapes consistent with the module (module defaults: heads=4, dim_head=32).
    B, C, H, W = 2, 8, 16, 16
    HEADS, DIM_HEAD = 4, 32
    HID = HEADS * DIM_HEAD

    key = jax.random.PRNGKey(0)
    k_x, k_wqkv, k_wout, k_bout = jax.random.split(key, 4)

    x = jax.random.normal(k_x, (B, C, H, W), dtype=jnp.float32)
    # Conv2d(dim, 3*hid, 1, bias=False) weight (3*hid, dim, 1, 1) -> (3*hid, dim)
    w_qkv = jax.random.normal(k_wqkv, (3 * HID, C), dtype=jnp.float32) * 0.1
    # Conv2d(hid, dim, 1) weight (dim, hid, 1, 1) -> (dim, hid), bias (dim,)
    w_out = jax.random.normal(k_wout, (C, HID), dtype=jnp.float32) * 0.1
    b_out = jax.random.normal(k_bout, (C,), dtype=jnp.float32) * 0.01

    y = linear_attention(x, w_qkv, w_out, b_out, heads=HEADS, dim_head=DIM_HEAD)
    y = jax.block_until_ready(y)

    y_ref = ref_linear_attention(x, w_qkv, w_out, b_out,
                                 heads=HEADS, dim_head=DIM_HEAD)
    # Kernel feeds the MXU bf16 inputs (f32 accumulation), so compare against
    # the pure-f32 reference with bf16-level tolerance.
    np.testing.assert_allclose(np.asarray(y), np.asarray(y_ref),
                               rtol=2e-2, atol=5e-3)

    print("KERNEL_OK")
</pallas_src>

<mosaic_0001>
module attributes {stable_mosaic.version = 11 : i64} {
  func.func @_linear_attention_kernel(%arg0: i32, %arg1: i32, %arg2: memref<1x8x256xbf16, #tpu.memory_space<vmem>>, %arg3: memref<1x96x8xbf16, #tpu.memory_space<vmem>>, %arg4: memref<1x8x32xbf16, #tpu.memory_space<vmem>>, %arg5: memref<8x1xf32, #tpu.memory_space<vmem>>, %arg6: memref<1x8x256xf32, #tpu.memory_space<vmem>>) attributes {dimension_semantics = [#tpu.dimension_semantics<parallel>, #tpu.dimension_semantics<arbitrary>], iteration_bounds = array<i64: 2, 4>, scalar_prefetch = 0 : i64, scratch_operands = 0 : i64, tpu.core_type = #tpu.core_type<tc>, window_params = [{transform_indices = @transform_0, window_bounds = array<i64: 1, 8, 256>}, {transform_indices = @transform_1, window_bounds = array<i64: 1, 96, 8>}, {transform_indices = @transform_2, window_bounds = array<i64: 1, 8, 32>}, {pipeline_mode = #tpu.pipeline_mode<synchronous>, transform_indices = @transform_3, window_bounds = array<i64: 8, 1>}, {transform_indices = @transform_4, window_bounds = array<i64: 1, 8, 256>}]} {
    %c0 = arith.constant 0 : index
    %c0_0 = arith.constant 0 : index
    %c0_1 = arith.constant 0 : index
    %0 = vector.load %arg2[%c0, %c0_0, %c0_1] : memref<1x8x256xbf16, #tpu.memory_space<vmem>>, vector<1x8x256xbf16>
    %1 = vector.shape_cast %0 : vector<1x8x256xbf16> to vector<8x256xbf16>
    %c0_2 = arith.constant 0 : index
    %c0_3 = arith.constant 0 : index
    %c0_4 = arith.constant 0 : index
    %2 = vector.load %arg3[%c0_2, %c0_3, %c0_4] : memref<1x96x8xbf16, #tpu.memory_space<vmem>>, vector<1x96x8xbf16>
    %3 = vector.shape_cast %2 : vector<1x96x8xbf16> to vector<96x8xbf16>
    %cst = arith.constant dense<0.000000e+00> : vector<96x256xf32>
    %4 = tpu.matmul %3, %1, %cst {dimension_numbers = #tpu.dot_dimension_numbers<[1], [0], [0], [1], [0, 0, 1, 1], [], []>} : vector<96x8xbf16>, vector<8x256xbf16>, vector<96x256xf32> -> vector<96x256xf32>
    %5 = vector.extract_strided_slice %4 {offsets = [0, 0], sizes = [32, 256], strides = [1, 1]} : vector<96x256xf32> to vector<32x256xf32>
    %6 = vector.extract_strided_slice %4 {offsets = [32, 0], sizes = [32, 256], strides = [1, 1]} : vector<96x256xf32> to vector<32x256xf32>
    %7 = vector.extract_strided_slice %4 {offsets = [64, 0], sizes = [32, 256], strides = [1, 1]} : vector<96x256xf32> to vector<32x256xf32>
    %cst_5 = arith.constant dense<0xFF800000> : vector<32xf32>
    %8 = vector.multi_reduction <maximumf>, %6, %cst_5 [1] : vector<32x256xf32> to vector<32xf32>
    %9 = vector.shape_cast %8 : vector<32xf32> to vector<32x1xf32>
    %10 = vector.broadcast %9 : vector<32x1xf32> to vector<32x256xf32>
    %11 = arith.subf %6, %10 : vector<32x256xf32>
    %12 = math.exp %11 : vector<32x256xf32>
    %cst_6 = arith.constant dense<0.000000e+00> : vector<32xf32>
    %13 = vector.multi_reduction <add>, %12, %cst_6 [1] : vector<32x256xf32> to vector<32xf32>
    %14 = vector.shape_cast %13 : vector<32xf32> to vector<32x1xf32>
    %15 = arith.truncf %12 : vector<32x256xf32> to vector<32x256xbf16>
    %16 = arith.truncf %7 : vector<32x256xf32> to vector<32x256xbf16>
    %cst_7 = arith.constant dense<0.000000e+00> : vector<32x32xf32>
    %17 = tpu.matmul %15, %16, %cst_7 {dimension_numbers = #tpu.dot_dimension_numbers<[1], [1], [0], [0], [0, 0, 1, 0], [], []>} : vector<32x256xbf16>, vector<32x256xbf16>, vector<32x32xf32> -> vector<32x32xf32>
    %18 = tpu.reciprocal %14 {approx = true} : vector<32x1xf32> -> vector<32x1xf32>
    %19 = vector.broadcast %18 : vector<32x1xf32> to vector<32x32xf32>
    %20 = arith.mulf %17, %19 : vector<32x32xf32>
    %c0_8 = arith.constant 0 : index
    %c0_9 = arith.constant 0 : index
    %c0_10 = arith.constant 0 : index
    %21 = vector.load %arg4[%c0_8, %c0_9, %c0_10] : memref<1x8x32xbf16, #tpu.memory_space<vmem>>, vector<1x8x32xbf16>
    %22 = vector.shape_cast %21 : vector<1x8x32xbf16> to vector<8x32xbf16>
    %23 = arith.truncf %20 : vector<32x32xf32> to vector<32x32xbf16>
    %cst_11 = arith.constant dense<0.000000e+00> : vector<8x32xf32>
    %24 = tpu.matmul %22, %23, %cst_11 {dimension_numbers = #tpu.dot_dimension_numbers<[1], [1], [0], [0], [0, 0, 1, 0], [], []>} : vector<8x32xbf16>, vector<32x32xbf16>, vector<8x32xf32> -> vector<8x32xf32>
    %25 = arith.truncf %24 : vector<8x32xf32> to vector<8x32xbf16>
    %26 = arith.truncf %5 : vector<32x256xf32> to vector<32x256xbf16>
    %cst_12 = arith.constant dense<0.000000e+00> : vector<8x256xf32>
    %27 = tpu.matmul %25, %26, %cst_12 {dimension_numbers = #tpu.dot_dimension_numbers<[1], [0], [0], [1], [0, 0, 1, 1], [], []>} : vector<8x32xbf16>, vector<32x256xbf16>, vector<8x256xf32> -> vector<8x256xf32>
    %c0_i32 = arith.constant 0 : i32
    %28 = arith.cmpi eq, %arg1, %c0_i32 : i32
    %29 = arith.extui %28 : i1 to i32
    %c0_i32_13 = arith.constant 0 : i32
    %30 = arith.cmpi ne, %29, %c0_i32_13 : i32
    scf.if %30 {
      %c0_20 = arith.constant 0 : index
      %c0_21 = arith.constant 0 : index
      %37 = vector.load %arg5[%c0_20, %c0_21] : memref<8x1xf32, #tpu.memory_space<vmem>>, vector<8x1xf32>
      %38 = vector.shape_cast %37 : vector<8x1xf32> to vector<8x1xf32>
      %39 = vector.broadcast %38 : vector<8x1xf32> to vector<8x256xf32>
      %c0_22 = arith.constant 0 : index
      %c0_23 = arith.constant 0 : index
      %c0_24 = arith.constant 0 : index
      %40 = vector.load %arg6[%c0_22, %c0_23, %c0_24] : memref<1x8x256xf32, #tpu.memory_space<vmem>>, vector<1x8x256xf32>
      %41 = vector.shape_cast %40 : vector<1x8x256xf32> to vector<8x256xf32>
      %42 = vector.shape_cast %39 : vector<8x256xf32> to vector<1x8x256xf32>
      tpu.vector_store %arg6[%c0_22, %c0_23, %c0_24], %42 {strides = array<i32>} : memref<1x8x256xf32, #tpu.memory_space<vmem>>, vector<1x8x256xf32>,
    } else {
    }
    %c0_14 = arith.constant 0 : index
    %c0_15 = arith.constant 0 : index
    %c0_16 = arith.constant 0 : index
    %31 = vector.load %arg6[%c0_14, %c0_15, %c0_16] : memref<1x8x256xf32, #tpu.memory_space<vmem>>, vector<1x8x256xf32>
    %32 = vector.shape_cast %31 : vector<1x8x256xf32> to vector<8x256xf32>
    %33 = arith.addf %32, %27 : vector<8x256xf32>
    %c0_17 = arith.constant 0 : index
    %c0_18 = arith.constant 0 : index
    %c0_19 = arith.constant 0 : index
    %34 = vector.load %arg6[%c0_17, %c0_18, %c0_19] : memref<1x8x256xf32, #tpu.memory_space<vmem>>, vector<1x8x256xf32>
    %35 = vector.shape_cast %34 : vector<1x8x256xf32> to vector<8x256xf32>
    %36 = vector.shape_cast %33 : vector<8x256xf32> to vector<1x8x256xf32>
    tpu.vector_store %arg6[%c0_17, %c0_18, %c0_19], %36 {strides = array<i32>} : memref<1x8x256xf32, #tpu.memory_space<vmem>>, vector<1x8x256xf32>,
    return
  }
  func.func @transform_0(%arg0: i32, %arg1: i32) -> (i32, i32, i32) {
    %c0_i32 = arith.constant 0 : i32
    %c0_i32_0 = arith.constant 0 : i32
    %c0_i32_1 = arith.constant 0 : i32
    return %arg0, %c0_i32, %c0_i32_0 : i32, i32, i32
  }
  func.func @transform_1(%arg0: i32, %arg1: i32) -> (i32, i32, i32) {
    %c0_i32 = arith.constant 0 : i32
    %c0_i32_0 = arith.constant 0 : i32
    %c0_i32_1 = arith.constant 0 : i32
    return %arg1, %c0_i32, %c0_i32_0 : i32, i32, i32
  }
  func.func @transform_2(%arg0: i32, %arg1: i32) -> (i32, i32, i32) {
    %c0_i32 = arith.constant 0 : i32
    %c0_i32_0 = arith.constant 0 : i32
    %c0_i32_1 = arith.constant 0 : i32
    return %arg1, %c0_i32, %c0_i32_0 : i32, i32, i32
  }
  func.func @transform_3(%arg0: i32, %arg1: i32) -> (i32, i32) {
    %c0_i32 = arith.constant 0 : i32
    %c0_i32_0 = arith.constant 0 : i32
    %c0_i32_1 = arith.constant 0 : i32
    return %c0_i32, %c0_i32_0 : i32, i32
  }
  func.func @transform_4(%arg0: i32, %arg1: i32) -> (i32, i32, i32) {
    %c0_i32 = arith.constant 0 : i32
    %c0_i32_0 = arith.constant 0 : i32
    %c0_i32_1 = arith.constant 0 : i32
    return %arg0, %c0_i32, %c0_i32_0 : i32, i32, i32
  }
}

</mosaic_0001>

<llo_original>
// kernel: tpu_custom_call.1
$region0: #{tpu_custom_call.1}
  #allocation0 [shape = 'u32[]', space=smem, size = 0x4, offset = 0x4, fixed_abs, tag = 'smem constant byte address 0x4 - core index']
  #allocation1 [shape = 'u32[144,128]{1,0:T(1,128)}', space=vmem, size = 0x12000, scoped, tag = 'internal scratch']
  %s0 = inlined_call_operand.vmem [shape: bf16[2,8,256], index: 0, kind: input, shape index: {}]
  %s1 = inlined_call_operand.vmem [shape: bf16[4,96,8], index: 1, kind: input, shape index: {}]
  %s2 = inlined_call_operand.vmem [shape: bf16[4,8,32], index: 2, kind: input, shape index: {}]
  %s3 = inlined_call_operand.vmem [shape: f32[8,1], index: 3, kind: input, shape index: {}]
  %s4 = inlined_call_operand.hbm [shape: f32[2,8,256], index: 4, kind: output, shape index: {}]
  %s5 = sld [smem:[#allocation0]]
  $region53: #{tpu_custom_call.1} parent=0
    _
  %s7 = ssub.s32 1, %s5
  %s8 = scalar_select 0, %s7, %s5
  $region1: #{tpu_custom_call.1} parent=0
    #allocation2 [shape = 'u8[16384]{0}', space=vmem, size = 0x4000, scoped, tag = 'output window, operand 0']
    #allocation3 [shape = 's32[2]{0}', space=sflag, size = 0x8, scoped, tag = 'scoped memory for tpu_custom_call.1']
    %9 = vsyncpa [#allocation3], 0
    %s10 = scalar_lea.sflag [#allocation3], 1
    %11 = vsyncpa %s10, 0
    loop: start=0, step=1, limit=10
    $region2: #{tpu_custom_call.1} parent=1 // loop_pre_header
      _
    $region3: #{tpu_custom_call.1} parent=1 // loop_header
      %s13 = sphi 0, %s17
      %p14 = scmp.ge.s32.totalorder %s13, 10
      %s20 = sphi 0, %s32
      %s21 = sphi 0, %s28
      %s22 = sphi 0, %s20
      %s23 = sphi 0, %s21
      %s24 = sphi 0, %s22
      %s25 = sphi 0, %s23
      %s35 = sphi 0, %s37
      %s38 = sphi 0, %s35
      %s39 = sphi 0, %s38
      %s55 = sphi 0, %s39
      %s61 = sphi 0, %s63
      %s64 = sphi 0, %s61
      %s65 = sphi 0, %s64
      %s81 = sphi 0, %s65
      %s87 = sphi 0, %s89
      %s90 = sphi 0, %s87
      %s91 = sphi 0, %s90
      %s107 = sphi 0, %s91
      %s111 = sphi 0, %s111
      %s113 = sphi 0, %s111
      %s114 = sphi 0, %s113
      %s128 = sphi 0, %s114
      %s134 = sphi 0, %s136
      %s137 = sphi 0, %s134
      %s138 = sphi 0, %s137
      %s154 = sphi 0, %s138
    $region4: #{tpu_custom_call.1} parent=1 // loop_header_branch
      %16 = sbr.rel (%p14) target = $region8
    $region5: #{tpu_custom_call.1} parent=1 // loop_body
      %s18 = ssub.s32 %s13, 1
      %s19 = ssub.s32 %s13, 2
      %s26 = sadd.s32 1, %s21
      %p27 = scmp.ge.s32.totalorder %s26, 4
      %s28 = scalar_select %p27, 0, %s26
      %s29 = sadd.s32 1, %s20
      %s30 = scalar_select %p27, %s29, %s20
      %p31 = scmp.ge.s32.totalorder %s30, 2
      %s32 = scalar_select %p31, 0, %s30
      %s33 = ssub.s32 %s20, %s32
      %p34 = scmp.eq.s32.totalorder %s33, 0
      %s36 = sadd.s32 %s35, 1
      %s37 = scalar_select %p34, %s35, %s36
      %p40 = pneg %p34
      %p41 = scmp.eq.s32.totalorder %s13, 7
      %p42 = por %p40, %p41
      %p43 = scmp.ne.s32.totalorder %s35, %s38
      %p44 = scmp.eq.s32.totalorder %s13, 0
      %p45 = por %p43, %p44
      %p46 = scmp.ne.s32.totalorder %s35, %s38
      %p47 = scmp.eq.s32.totalorder %s18, 7
      %p48 = por %p46, %p47
      %p49 = scmp.ne.s32.totalorder %s38, %s39
      %p50 = scmp.eq.s32.totalorder %s18, 0
      %p51 = por %p49, %p50
      %p52 = scmp.ne.s32.totalorder %s38, %s39
      %p53 = scmp.eq.s32.totalorder %s19, 7
      %p54 = por %p52, %p53
      %p56 = scmp.ne.s32.totalorder %s39, %s55
      %p57 = scmp.eq.s32.totalorder %s19, 0
      %p58 = por %p56, %p57
      %s59 = ssub.s32 %s21, %s28
      %p60 = scmp.eq.s32.totalorder %s59, 0
      %s62 = sadd.s32 %s61, 1
      %s63 = scalar_select %p60, %s61, %s62
      %p66 = pneg %p60
      %p67 = scmp.eq.s32.totalorder %s13, 7
      %p68 = por %p66, %p67
      %p69 = scmp.ne.s32.totalorder %s61, %s64
      %p70 = scmp.eq.s32.totalorder %s13, 0
      %p71 = por %p69, %p70
      %p72 = scmp.ne.s32.totalorder %s61, %s64
      %p73 = scmp.eq.s32.totalorder %s18, 7
      %p74 = por %p72, %p73
      %p75 = scmp.ne.s32.totalorder %s64, %s65
      %p76 = scmp.eq.s32.totalorder %s18, 0
      %p77 = por %p75, %p76
      %p78 = scmp.ne.s32.totalorder %s64, %s65
      %p79 = scmp.eq.s32.totalorder %s19, 7
      %p80 = por %p78, %p79
      %p82 = scmp.ne.s32.totalorder %s65, %s81
      %p83 = scmp.eq.s32.totalorder %s19, 0
      %p84 = por %p82, %p83
      %s85 = ssub.s32 %s21, %s28
      %p86 = scmp.eq.s32.totalorder %s85, 0
      %s88 = sadd.s32 %s87, 1
      %s89 = scalar_select %p86, %s87, %s88
      %p92 = pneg %p86
      %p93 = scmp.eq.s32.totalorder %s13, 7
      %p94 = por %p92, %p93
      %p95 = scmp.ne.s32.totalorder %s87, %s90
      %p96 = scmp.eq.s32.totalorder %s13, 0
      %p97 = por %p95, %p96
      %p98 = scmp.ne.s32.totalorder %s87, %s90
      %p99 = scmp.eq.s32.totalorder %s18, 7
      %p100 = por %p98, %p99
      %p101 = scmp.ne.s32.totalorder %s90, %s91
      %p102 = scmp.eq.s32.totalorder %s18, 0
      %p103 = por %p101, %p102
      %p104 = scmp.ne.s32.totalorder %s90, %s91
      %p105 = scmp.eq.s32.totalorder %s19, 7
      %p106 = por %p104, %p105
      %p108 = scmp.ne.s32.totalorder %s91, %s107
      %p109 = scmp.eq.s32.totalorder %s19, 0
      %p110 = por %p108, %p109
      %s112 = sadd.s32 %s111, 1
      %p115 = scmp.eq.s32.totalorder %s13, 7
      %p116 = scmp.ne.s32.totalorder %s111, %s113
      %p117 = scmp.eq.s32.totalorder %s13, 0
      %p118 = por %p116, %p117
      %p119 = scmp.ne.s32.totalorder %s111, %s113
      %p120 = scmp.eq.s32.totalorder %s18, 7
      %p121 = por %p119, %p120
      %p122 = scmp.ne.s32.totalorder %s113, %s114
      %p123 = scmp.eq.s32.totalorder %s18, 0
      %p124 = por %p122, %p123
      %p125 = scmp.ne.s32.totalorder %s113, %s114
      %p126 = scmp.eq.s32.totalorder %s19, 7
      %p127 = por %p125, %p126
      %p129 = scmp.ne.s32.totalorder %s114, %s128
      %p130 = scmp.eq.s32.totalorder %s19, 0
      %p131 = por %p129, %p130
      %s132 = ssub.s32 %s20, %s32
      %p133 = scmp.eq.s32.totalorder %s132, 0
      %s135 = sadd.s32 %s134, 1
      %s136 = scalar_select %p133, %s134, %s135
      %p139 = pneg %p133
      %p140 = scmp.eq.s32.totalorder %s13, 7
      %p141 = por %p139, %p140
      %p142 = scmp.ne.s32.totalorder %s134, %s137
      %p143 = scmp.eq.s32.totalorder %s13, 0
      %p144 = por %p142, %p143
      %p145 = scmp.ne.s32.totalorder %s134, %s137
      %p146 = scmp.eq.s32.totalorder %s18, 7
      %p147 = por %p145, %p146
      %p148 = scmp.ne.s32.totalorder %s137, %s138
      %p149 = scmp.eq.s32.totalorder %s18, 0
      %p150 = por %p148, %p149
      %p151 = scmp.ne.s32.totalorder %s137, %s138
      %p152 = scmp.eq.s32.totalorder %s19, 7
      %p153 = por %p151, %p152
      %p155 = scmp.ne.s32.totalorder %s138, %s154
      %p156 = scmp.eq.s32.totalorder %s19, 0
      %p157 = por %p155, %p156
      %p158 = scmp.le.s32.totalorder 1, %s13
      %p159 = scmp.lt.s32.totalorder %s13, 9
      %p160 = pnand %p158, %p159
      %p161 = pneg %p160
      // Predicated region
      $region9: #{tpu_custom_call.1} parent=5 // pred_check
        _
      $region10: #{tpu_custom_call.1} parent=5 // pred_check_branch
        %163 = sbr.rel (%p160) target = $region12
      $region11: #{tpu_custom_call.1} parent=5 // pred_region
        %s164 = ssub.s32 %s13, 1
        // Predicated region
        $region13: #{tpu_custom_call.1} parent=11 // pred_check
          %p165 = pneg %p124
        $region14: #{tpu_custom_call.1} parent=11 // pred_check_branch
          %167 = sbr.rel (%p165) target = $region16
        $region15: #{tpu_custom_call.1} parent=11 // pred_region
          _
        $region16: #{tpu_custom_call.1} parent=11 // pred_fallthru
          _
      $region12: #{tpu_custom_call.1} parent=5 // pred_fallthru
        _
      %p168 = scmp.lt.s32.totalorder %s13, 8
      // Predicated region
      $region17: #{tpu_custom_call.1} parent=5 // pred_check
        %p169 = pneg %p168
      $region18: #{tpu_custom_call.1} parent=5 // pred_check_branch
        %171 = sbr.rel (%p169) target = $region20
      $region19: #{tpu_custom_call.1} parent=5 // pred_region
        // Predicated region
        $region21: #{tpu_custom_call.1} parent=19 // pred_check
          %p172 = pneg %p45
        $region22: #{tpu_custom_call.1} parent=19 // pred_check_branch
          %174 = sbr.rel (%p172) target = $region24
        $region23: #{tpu_custom_call.1} parent=19 // pred_region
          %p175 = scmp.lt.s32.totalorder %s20, 1
          %s176 = scalar_select %p175, %s20, 1
          %s177 = smul.addr %s176, 2
          %s178 = smul.addr %s177, 4
          %s179 = scalar_lea.vmem %s0, %s178
        $region24: #{tpu_custom_call.1} parent=19 // pred_fallthru
          _
        // Predicated region
        $region25: #{tpu_custom_call.1} parent=19 // pred_check
          %p180 = pneg %p71
        $region26: #{tpu_custom_call.1} parent=19 // pred_check_branch
          %182 = sbr.rel (%p180) target = $region28
        $region27: #{tpu_custom_call.1} parent=19 // pred_region
          %p183 = scmp.lt.s32.totalorder %s21, 3
          %s184 = scalar_select %p183, %s21, 3
          %s185 = smul.addr %s184, 12
          %s186 = smul.addr %s185, 4
          %s187 = scalar_lea.vmem %s1, %s186
        $region28: #{tpu_custom_call.1} parent=19 // pred_fallthru
          _
        // Predicated region
        $region29: #{tpu_custom_call.1} parent=19 // pred_check
          %p188 = pneg %p97
        $region30: #{tpu_custom_call.1} parent=19 // pred_check_branch
          %190 = sbr.rel (%p188) target = $region32
        $region31: #{tpu_custom_call.1} parent=19 // pred_region
          %p191 = scmp.lt.s32.totalorder %s21, 3
          %s192 = scalar_select %p191, %s21, 3
          %s193 = smul.addr %s192, 4
          %s194 = scalar_lea.vmem %s2, %s193
        $region32: #{tpu_custom_call.1} parent=19 // pred_fallthru
          _
      $region20: #{tpu_custom_call.1} parent=5 // pred_fallthru
        _
      %p195 = scmp.le.s32.totalorder 1, %s13
      %p196 = scmp.lt.s32.totalorder %s13, 9
      %p197 = pnand %p195, %p196
      %p198 = pneg %p197
      // Predicated region
      $region33: #{tpu_custom_call.1} parent=5 // pred_check
        _
      $region34: #{tpu_custom_call.1} parent=5 // pred_check_branch
        %200 = sbr.rel (%p197) target = $region36
      $region35: #{tpu_custom_call.1} parent=5 // pred_region
        %s201 = ssub.s32 %s13, 1
        %p202 = scmp.lt.s32.totalorder %s22, 1
        %s203 = scalar_select %p202, %s22, 1
        %s204 = smul.addr %s203, 2
        %s205 = smul.addr %s204, 4
        %s206 = scalar_lea.vmem %s0, %s205
        %p207 = pneg %p51
        %p208 = pneg %p48
        %p209 = scmp.lt.s32.totalorder %s23, 3
        %s210 = scalar_select %p209, %s23, 3
        %s211 = smul.addr %s210, 12
        %s212 = smul.addr %s211, 4
        %s213 = scalar_lea.vmem %s1, %s212
        %p214 = pneg %p77
        %p215 = pneg %p74
        %p216 = scmp.lt.s32.totalorder %s23, 3
        %s217 = scalar_select %p216, %s23, 3
        %s218 = smul.addr %s217, 4
        %s219 = scalar_lea.vmem %s2, %s218
        %p220 = pneg %p103
        %p221 = pneg %p100
        %p222 = pneg %p124
        %p223 = pneg %p121
        %p224 = pneg %p150
        %p225 = pneg %p147
        %s226 = sand.u32 %s137, 1
        %s227 = scalar_lea.sflag [#allocation3], %s226
        %s228 = sand.u32 %s137, 1
        %s229 = smul.addr %s228, 16
        %s230 = scalar_lea.vmem [#allocation2], %s229
        %p231 = scmp.lt.s32.totalorder %s22, 1
        %s232 = scalar_select %p231, %s22, 1
        %s233 = smul.addr %s232, 2
        %s234 = smul.addr %s233, 4
        %s235 = scalar_lea.vmem %s0, %s234
        %p236 = scmp.lt.s32.totalorder %s23, 3
        %s237 = scalar_select %p236, %s23, 3
        %s238 = smul.addr %s237, 12
        %s239 = smul.addr %s238, 4
        %s240 = scalar_lea.vmem %s1, %s239
        %p241 = scmp.lt.s32.totalorder %s23, 3
        %s242 = scalar_select %p241, %s23, 3
        %s243 = smul.addr %s242, 4
        %s244 = scalar_lea.vmem %s2, %s243
        %v246 = vld [vmem:[%s235] sm:$0xff]
        %v247 = vld [vmem:[%s240] sm:$0xf]
        %v248 = vld [vmem:[%s240 + $0x4] sm:$0xf]
        %v249 = vld [vmem:[%s240 + $0x8] sm:$0xf]
        %v250 = vld [vmem:[%s240 + $0xc] sm:$0xf]
        %v251 = vld [vmem:[%s240 + $0x10] sm:$0xf]
        %v252 = vld [vmem:[%s240 + $0x14] sm:$0xf]
        %v253 = vld [vmem:[%s240 + $0x18] sm:$0xf]
        %v254 = vld [vmem:[%s240 + $0x1c] sm:$0xf]
        %v255 = vld [vmem:[%s240 + $0x20] sm:$0xf]
        %v256 = vld [vmem:[%s240 + $0x24] sm:$0xf]
        %v257 = vld [vmem:[%s240 + $0x28] sm:$0xf]
        %v258 = vld [vmem:[%s240 + $0x2c] sm:$0xf]
        %v271 = vunpack.c.l.b16 %v247
        %v272 = vunpack.c.l.b16 %v248
        %v273 = vunpack.c.l.b16 %v249
        %v274 = vunpack.c.l.b16 %v250
        %v275 = vunpack.c.l.b16 %v251
        %v276 = vunpack.c.l.b16 %v252
        %v277 = vunpack.c.l.b16 %v253
        %v278 = vunpack.c.l.b16 %v254
        %v279 = vunpack.c.l.b16 %v255
        %v280 = vunpack.c.l.b16 %v256
        %v281 = vunpack.c.l.b16 %v257
        %v282 = vunpack.c.l.b16 %v258
        %v283 = vpack.c.b16 %v272, %v271
        %v284 = vpack.c.b16 %v274, %v273
        %v285 = vpack.c.b16 %v276, %v275
        %v286 = vpack.c.b16 %v278, %v277
        %v287 = vpack.c.b16 %v280, %v279
        %v288 = vpack.c.b16 %v282, %v281
        %v290 = vunpack.c.l.b16 %v246
        %v291 = vunpack.c.h.b16 %v246
        %v292 = vpack.c.b16 %v290, %v290
        %v293 = vpack.c.b16 %v291, %v291
        %vm294 = vcmask 64512
        %v296 = vsel %vm294, %v283, 0
        %v299 = vsel %vm294, %v284, 0
        %v302 = vsel %vm294, %v285, 0
        %v305 = vsel %vm294, %v286, 0
        %v308 = vsel %vm294, %v287, 0
        %v311 = vsel %vm294, %v288, 0
        %vm313 = vcmask 1043456
        %v315 = vsel %vm313, %v292, 0
        %v318 = vsel %vm313, %v293, 0
        %320 = vmatprep.subr.bf16.mxu0 0
        %321 = vmatpush1.bf16.msra.mxu0 0
        %322 = vmatprep.subr.bf16.mxu0 0
        %323 = vmatpush1.bf16.msra.mxu0 0
        %324 = vmatprep.subr.bf16.mxu0 0
        %325 = vmatpush1.bf16.msra.mxu0 0
        %326 = vmatprep.subr.bf16.mxu0 0
        %327 = vmatpush1.bf16.msra.mxu0 0
        %328 = vmatprep.subr.bf16.mxu0 0
        %329 = vmatpush1.bf16.msra.mxu0 0
        %330 = vmatprep.subr.bf16.mxu0 0
        %331 = vmatpush1.bf16.msra.mxu0 0
        %332 = vmatprep.subr.bf16.mxu0 0
        %333 = vmatpush1.bf16.msra.mxu0 0
        %334 = vmatprep.subr.bf16.mxu0 %v318
        %335 = vmatpush1.bf16.msra.mxu0 %v315
        %336 = vmatprep.subr.bf16.mxu0 0
        %337 = vmatpush2.bf16.msra.mxu0 0
        %338 = vmatprep.subr.bf16.mxu0 0
        %339 = vmatpush2.bf16.msra.mxu0 0
        %340 = vmatprep.subr.bf16.mxu0 0
        %341 = vmatpush2.bf16.msra.mxu0 0
        %342 = vmatprep.subr.bf16.mxu0 0
        %343 = vmatpush2.bf16.msra.mxu0 0
        %344 = vmatprep.subr.bf16.mxu0 0
        %345 = vmatpush2.bf16.msra.mxu0 0
        %346 = vmatprep.subr.bf16.mxu0 0
        %347 = vmatpush2.bf16.msra.mxu0 0
        %348 = vmatprep.subr.bf16.mxu0 0
        %349 = vmatpush2.bf16.msra.mxu0 0
        %350 = vmatprep.subr.bf16.mxu0 0
        %351 = vmatpush2.bf16.msra.mxu0 0
        %352 = vmatprep.mubr.bf16.mxu0 0
        %353 = vmatmul.mubr.bf16.gmra.mxu0 %v296
        %v354 = vpop.f32.mrf.mxu0
        %v355 = vadd.f32 0.0, %v354
        %v356 = vpop.f32.mrf.mxu0
        %v357 = vadd.f32 0.0, %v356
        %v358 = vpop.f32.mrf.mxu0
        %v359 = vadd.f32 0.0, %v358
        %v360 = vpop.f32.mrf.mxu0
        %v361 = vadd.f32 0.0, %v360
        %362 = vmatprep.mubr.bf16.mxu0 0
        %363 = vmatmul.mubr.bf16.gmra.mxu0 %v299
        %v364 = vpop.f32.mrf.mxu0
        %v365 = vadd.f32 0.0, %v364
        %v366 = vpop.f32.mrf.mxu0
        %v367 = vadd.f32 0.0, %v366
        %v368 = vpop.f32.mrf.mxu0
        %v369 = vadd.f32 0.0, %v368
        %v370 = vpop.f32.mrf.mxu0
        %v371 = vadd.f32 0.0, %v370
        %372 = vmatprep.mubr.bf16.mxu0 0
        %373 = vmatmul.mubr.bf16.gmra.mxu0 %v302
        %v374 = vpop.f32.mrf.mxu0
        %v375 = vadd.f32 0.0, %v374
        %v376 = vpop.f32.mrf.mxu0
        %v377 = vadd.f32 0.0, %v376
        %v378 = vpop.f32.mrf.mxu0
        %v379 = vadd.f32 0.0, %v378
        %v380 = vpop.f32.mrf.mxu0
        %v381 = vadd.f32 0.0, %v380
        %382 = vmatprep.mubr.bf16.mxu0 0
        %383 = vmatmul.mubr.bf16.gmra.mxu0 %v305
        %v384 = vpop.f32.mrf.mxu0
        %v385 = vadd.f32 0.0, %v384
        %v386 = vpop.f32.mrf.mxu0
        %v387 = vadd.f32 0.0, %v386
        %v388 = vpop.f32.mrf.mxu0
        %v389 = vadd.f32 0.0, %v388
        %v390 = vpop.f32.mrf.mxu0
        %v391 = vadd.f32 0.0, %v390
        %392 = vmatprep.mubr.bf16.mxu0 0
        %393 = vmatmul.mubr.bf16.gmra.mxu0 %v308
        %v394 = vpop.f32.mrf.mxu0
        %v395 = vadd.f32 0.0, %v394
        %v396 = vpop.f32.mrf.mxu0
        %v397 = vadd.f32 0.0, %v396
        %v398 = vpop.f32.mrf.mxu0
        %v399 = vadd.f32 0.0, %v398
        %v400 = vpop.f32.mrf.mxu0
        %v401 = vadd.f32 0.0, %v400
        %402 = vmatprep.mubr.bf16.mxu0 0
        %403 = vmatmul.mubr.bf16.gmra.mxu0 %v311
        %v404 = vpop.f32.mrf.mxu0
        %v405 = vadd.f32 0.0, %v404
        %v406 = vpop.f32.mrf.mxu0
        %v407 = vadd.f32 0.0, %v406
        %v408 = vpop.f32.mrf.mxu0
        %v409 = vadd.f32 0.0, %v408
        %v410 = vpop.f32.mrf.mxu0
        %v411 = vadd.f32 0.0, %v410
        %412 = vdwg.mxu0
        %v413 = vmax.f32 %v375, %v377
        %414 = vmax.xlane.f32.xlu0 %v413
        %v415 = vpop.xlane.xlu0 %414
        %v416 = vmax.f32 %v379, %v381
        %417 = vmax.xlane.f32.xlu0 %v416
        %v418 = vpop.xlane.xlu0 %417
        %v419 = vmax.f32 %v385, %v387
        %420 = vmax.xlane.f32.xlu0 %v419
        %v421 = vpop.xlane.xlu0 %420
        %v422 = vmax.f32 %v389, %v391
        %423 = vmax.xlane.f32.xlu0 %v422
        %v424 = vpop.xlane.xlu0 %423
        %v425 = vsub.f32 %v375, %v415
        %v426 = vsub.f32 %v377, %v415
        %v427 = vsub.f32 %v379, %v418
        %v428 = vsub.f32 %v381, %v418
        %v429 = vsub.f32 %v385, %v421
        %v430 = vsub.f32 %v387, %v421
        %v431 = vsub.f32 %v389, %v424
        %v432 = vsub.f32 %v391, %v424
        %v433 = vmul.f32 %v425, 1.442695
        %v434 = vpow.pop %v433
        %v435 = vmul.f32 %v426, 1.442695
        %v436 = vpow.pop %v435
        %v437 = vmul.f32 %v427, 1.442695
        %v438 = vpow.pop %v437
        %v439 = vmul.f32 %v428, 1.442695
        %v440 = vpow.pop %v439
        %v441 = vmul.f32 %v429, 1.442695
        %v442 = vpow.pop %v441
        %v443 = vmul.f32 %v430, 1.442695
        %v444 = vpow.pop %v443
        %v445 = vmul.f32 %v431, 1.442695
        %v446 = vpow.pop %v445
        %v447 = vmul.f32 %v432, 1.442695
        %v448 = vpow.pop %v447
        %v449 = vadd.f32 %v434, %v436
        %450 = vadd.xlane.f32.xlu0 %v449
        %v451 = vpop.xlane.xlu0 %450
        %v452 = vadd.f32 %v438, %v440
        %453 = vadd.xlane.f32.xlu0 %v452
        %v454 = vpop.xlane.xlu0 %453
        %v455 = vadd.f32 %v442, %v444
        %456 = vadd.xlane.f32.xlu0 %v455
        %v457 = vpop.xlane.xlu0 %456
        %v458 = vadd.f32 %v446, %v448
        %459 = vadd.xlane.f32.xlu0 %v458
        %v460 = vpop.xlane.xlu0 %459
        %v461 = vpack.c.bf16 %v438, %v434
        %v462 = vpack.c.bf16 %v440, %v436
        %v463 = vpack.c.bf16 %v446, %v442
        %v464 = vpack.c.bf16 %v448, %v444
        %v465 = vpack.c.bf16 %v399, %v395
        %v466 = vpack.c.bf16 %v401, %v397
        %v467 = vpack.c.bf16 %v409, %v405
        %v468 = vpack.c.bf16 %v411, %v407
        %469 = vmatprep.subr.bf16.mxu0 0
        %470 = vmatpush1.bf16.xpose.msra.mxu0 0
        %471 = vmatprep.subr.bf16.mxu0 0
        %472 = vmatpush1.bf16.xpose.msra.mxu0 0
        %473 = vmatprep.subr.bf16.mxu0 0
        %474 = vmatpush1.bf16.xpose.msra.mxu0 0
        %475 = vmatprep.subr.bf16.mxu0 0
        %476 = vmatpush1.bf16.xpose.msra.mxu0 0
        %477 = vmatprep.subr.bf16.mxu0 0
        %478 = vmatpush1.bf16.xpose.msra.mxu0 0
        %479 = vmatprep.subr.bf16.mxu0 0
        %480 = vmatpush1.bf16.xpose.msra.mxu0 0
        %481 = vmatprep.subr.bf16.mxu0 %v468
        %482 = vmatpush1.bf16.xpose.msra.mxu0 %v467
        %483 = vmatprep.subr.bf16.mxu0 %v466
        %484 = vmatpush1.bf16.xpose.msra.mxu0 %v465
        %485 = vmatprep.subr.bf16.mxu0 0
        %486 = vmatpush2.bf16.xpose.msra.mxu0 0
        %487 = vmatprep.subr.bf16.mxu0 0
        %488 = vmatpush2.bf16.xpose.msra.mxu0 0
        %489 = vmatprep.subr.bf16.mxu0 0
        %490 = vmatpush2.bf16.xpose.msra.mxu0 0
        %491 = vmatprep.subr.bf16.mxu0 0
        %492 = vmatpush2.bf16.xpose.msra.mxu0 0
        %493 = vmatprep.subr.bf16.mxu0 0
        %494 = vmatpush2.bf16.xpose.msra.mxu0 0
        %495 = vmatprep.subr.bf16.mxu0 0
        %496 = vmatpush2.bf16.xpose.msra.mxu0 0
        %497 = vmatprep.subr.bf16.mxu0 0
        %498 = vmatpush2.bf16.xpose.msra.mxu0 0
        %499 = vmatprep.subr.bf16.mxu0 0
        %500 = vmatpush2.bf16.xpose.msra.mxu0 0
        %501 = vmatprep.mubr.bf16.mxu0 %v462
        %502 = vmatmul.mubr.bf16.gmra.mxu0 %v461
        %v503 = vpop.f32.mrf.mxu0
        %v504 = vadd.f32 0.0, %v503
        %v505 = vpop.f32.mrf.mxu0
        %v506 = vpop.f32.mrf.mxu0
        %v507 = vadd.f32 0.0, %v506
        %v508 = vpop.f32.mrf.mxu0
        %509 = vmatprep.mubr.bf16.mxu0 %v464
        %510 = vmatmul.mubr.bf16.gmra.mxu0 %v463
        %v511 = vpop.f32.mrf.mxu0
        %v512 = vadd.f32 0.0, %v511
        %v513 = vpop.f32.mrf.mxu0
        %v514 = vpop.f32.mrf.mxu0
        %v515 = vadd.f32 0.0, %v514
        %v516 = vpop.f32.mrf.mxu0
        %517 = vdwg.mxu0
        %v518 = vrcp.pop %v451
        %v519 = vrcp.pop %v454
        %v520 = vrcp.pop %v457
        %v521 = vrcp.pop %v460
        %v522 = vmul.f32 %v504, %v518
        %v523 = vmul.f32 %v507, %v519
        %v524 = vmul.f32 %v512, %v520
        %v525 = vmul.f32 %v515, %v521
        %v526 = vld [vmem:[%s244] sm:$0xf]
        %v527 = vpack.c.bf16 %v523, %v522
        %v528 = vpack.c.bf16 %v525, %v524
        %vm529 = vcmask 261120
        %v531 = vsel %vm529, %v526, 0
        %v534 = vsel %vm529, %v527, 0
        %v537 = vsel %vm529, %v528, 0
        %539 = vmatprep.subr.bf16.mxu0 0
        %540 = vmatpush1.bf16.xpose.msra.mxu0 0
        %541 = vmatprep.subr.bf16.mxu0 0
        %542 = vmatpush1.bf16.xpose.msra.mxu0 0
        %543 = vmatprep.subr.bf16.mxu0 0
        %544 = vmatpush1.bf16.xpose.msra.mxu0 0
        %545 = vmatprep.subr.bf16.mxu0 0
        %546 = vmatpush1.bf16.xpose.msra.mxu0 0
        %547 = vmatprep.subr.bf16.mxu0 0
        %548 = vmatpush1.bf16.xpose.msra.mxu0 0
        %549 = vmatprep.subr.bf16.mxu0 0
        %550 = vmatpush1.bf16.xpose.msra.mxu0 0
        %551 = vmatprep.subr.bf16.mxu0 0
        %552 = vmatpush1.bf16.xpose.msra.mxu0 %v537
        %553 = vmatprep.subr.bf16.mxu0 0
        %554 = vmatpush1.bf16.xpose.msra.mxu0 %v534
        %555 = vmatprep.subr.bf16.mxu0 0
        %556 = vmatpush2.bf16.xpose.msra.mxu0 0
        %557 = vmatprep.subr.bf16.mxu0 0
        %558 = vmatpush2.bf16.xpose.msra.mxu0 0
        %559 = vmatprep.subr.bf16.mxu0 0
        %560 = vmatpush2.bf16.xpose.msra.mxu0 0
        %561 = vmatprep.subr.bf16.mxu0 0
        %562 = vmatpush2.bf16.xpose.msra.mxu0 0
        %563 = vmatprep.subr.bf16.mxu0 0
        %564 = vmatpush2.bf16.xpose.msra.mxu0 0
        %565 = vmatprep.subr.bf16.mxu0 0
        %566 = vmatpush2.bf16.xpose.msra.mxu0 0
        %567 = vmatprep.subr.bf16.mxu0 0
        %568 = vmatpush2.bf16.xpose.msra.mxu0 0
        %569 = vmatprep.subr.bf16.mxu0 0
        %570 = vmatpush2.bf16.xpose.msra.mxu0 0
        %571 = vmatprep.mubr.bf16.mxu0 0
        %572 = vmatmul.mubr.bf16.gmra.mxu0 %v531
        %v573 = vpop.f32.mrf.mxu0
        %v574 = vadd.f32 0.0, %v573
        %v575 = vpop.f32.mrf.mxu0
        %v576 = vpop.f32.mrf.mxu0
        %v577 = vpop.f32.mrf.mxu0
        %578 = vdwg.mxu0
        %v579 = vpack.c.bf16 %v574, %v574
        %v580 = vpack.c.bf16 %v359, %v355
        %v581 = vpack.c.bf16 %v361, %v357
        %v582 = vpack.c.bf16 %v369, %v365
        %v583 = vpack.c.bf16 %v371, %v367
        %v585 = vsel %vm529, %v579, 0
        %587 = vmatprep.subr.bf16.mxu0 0
        %588 = vmatpush1.bf16.msra.mxu0 0
        %589 = vmatprep.subr.bf16.mxu0 0
        %590 = vmatpush1.bf16.msra.mxu0 0
        %591 = vmatprep.subr.bf16.mxu0 0
        %592 = vmatpush1.bf16.msra.mxu0 0
        %593 = vmatprep.subr.bf16.mxu0 0
        %594 = vmatpush1.bf16.msra.mxu0 0
        %595 = vmatprep.subr.bf16.mxu0 0
        %596 = vmatpush1.bf16.msra.mxu0 0
        %597 = vmatprep.subr.bf16.mxu0 0
        %598 = vmatpush1.bf16.msra.mxu0 0
        %599 = vmatprep.subr.bf16.mxu0 %v583
        %600 = vmatpush1.bf16.msra.mxu0 %v582
        %601 = vmatprep.subr.bf16.mxu0 %v581
        %602 = vmatpush1.bf16.msra.mxu0 %v580
        %603 = vmatprep.subr.bf16.mxu0 0
        %604 = vmatpush2.bf16.msra.mxu0 0
        %605 = vmatprep.subr.bf16.mxu0 0
        %606 = vmatpush2.bf16.msra.mxu0 0
        %607 = vmatprep.subr.bf16.mxu0 0
        %608 = vmatpush2.bf16.msra.mxu0 0
        %609 = vmatprep.subr.bf16.mxu0 0
        %610 = vmatpush2.bf16.msra.mxu0 0
        %611 = vmatprep.subr.bf16.mxu0 0
        %612 = vmatpush2.bf16.msra.mxu0 0
        %613 = vmatprep.subr.bf16.mxu0 0
        %614 = vmatpush2.bf16.msra.mxu0 0
        %615 = vmatprep.subr.bf16.mxu0 0
        %616 = vmatpush2.bf16.msra.mxu0 0
        %617 = vmatprep.subr.bf16.mxu0 0
        %618 = vmatpush2.bf16.msra.mxu0 0
        %619 = vmatprep.mubr.bf16.mxu0 0
        %620 = vmatmul.mubr.bf16.gmra.mxu0 %v585
        %v621 = vpop.f32.mrf.mxu0
        %v622 = vadd.f32 0.0, %v621
        %v623 = vpop.f32.mrf.mxu0
        %v624 = vadd.f32 0.0, %v623
        %v625 = vpop.f32.mrf.mxu0
        %v626 = vpop.f32.mrf.mxu0
        %627 = vdwg.mxu0
        %p628 = scmp.eq.s32.totalorder %s23, 0
        // Predicated region
        $region37: #{tpu_custom_call.1} parent=35 // pred_check
          %p629 = pneg %p628
        $region38: #{tpu_custom_call.1} parent=35 // pred_check_branch
          %631 = sbr.rel (%p629) target = $region40
        $region39: #{tpu_custom_call.1} parent=35 // pred_region
          %v632 = vld [vmem:[%s3] sm:$0xff]
          %634 = vset.pattern.permute.xlu0 0
          %635 = vperm.xlu0 %634, %v632
          %v636 = vpop.permute.xlu0 %635
          %638 = vst [vmem:[%s230] sm:$0xff] %v636
          %639 = vst [vmem:[%s230 + $0x8] sm:$0xff] %v636
        $region40: #{tpu_custom_call.1} parent=35 // pred_fallthru
          _
        %v640 = vld [vmem:[%s230] sm:$0xff]
        %v641 = vld [vmem:[%s230 + $0x8] sm:$0xff]
        %v642 = vadd.f32 %v640, %v622
        %v643 = vadd.f32 %v641, %v624
        %644 = vst [vmem:[%s230] sm:$0xff] %v642
        %645 = vst [vmem:[%s230 + $0x8] sm:$0xff] %v643
        %s646 = sand.u32 %s137, 1
        %s647 = scalar_lea.sflag [#allocation3], %s646
        %s648 = sand.u32 %s137, 1
        %s649 = smul.addr %s648, 16
        %s650 = scalar_lea.vmem [#allocation2], %s649
        // Predicated region
        $region41: #{tpu_custom_call.1} parent=35 // pred_check
          %p651 = pneg %p147
        $region42: #{tpu_custom_call.1} parent=35 // pred_check_branch
          %653 = sbr.rel (%p651) target = $region44
        $region43: #{tpu_custom_call.1} parent=35 // pred_region
          %s655 = ssub.s32 256, 256
          %656 = vsyncadd %s647, %s655
          %s657 = smul.addr %s22, 2
          %s658 = smul.addr %s657, 128
          %s659 = scalar_lea.hbm %s4, %s658
          %s661 = sshll.u32 %s650, 4
          %s662 = int_to_ptr.vmem [resolvable:$true] %s661
          %664 = dma.vmem_to_hbm [thread:$0]  %s662, 256, %s659, %s647
        $region44: #{tpu_custom_call.1} parent=35 // pred_fallthru
          _
      $region36: #{tpu_custom_call.1} parent=5 // pred_fallthru
        _
      %p665 = scmp.le.s32.totalorder 2, %s13
      // Predicated region
      $region45: #{tpu_custom_call.1} parent=5 // pred_check
        %p666 = pneg %p665
      $region46: #{tpu_custom_call.1} parent=5 // pred_check_branch
        %668 = sbr.rel (%p666) target = $region48
      $region47: #{tpu_custom_call.1} parent=5 // pred_region
        %s669 = ssub.s32 %s13, 2
        // Predicated region
        $region49: #{tpu_custom_call.1} parent=47 // pred_check
          %p670 = pneg %p153
        $region50: #{tpu_custom_call.1} parent=47 // pred_check_branch
          %672 = sbr.rel (%p670) target = $region52
        $region51: #{tpu_custom_call.1} parent=47 // pred_region
          %s673 = sand.u32 %s138, 1
          %s674 = scalar_lea.sflag [#allocation3], %s673
          %s675 = sand.u32 %s138, 1
          %s676 = smul.addr %s675, 16
          %s677 = scalar_lea.vmem [#allocation2], %s676
          %678 = dma.done %s674, 256
        $region52: #{tpu_custom_call.1} parent=47 // pred_fallthru
          _
      $region48: #{tpu_custom_call.1} parent=5 // pred_fallthru
        _
    $region6: #{tpu_custom_call.1} parent=1 // loop_footer
      %s17 = sadd.s32 1, %s13
    $region7: #{tpu_custom_call.1} parent=1 // loop_footer_branch
      %12 = sbr.rel target = $region3
    $region8: #{tpu_custom_call.1} parent=1 // loop_exit
      _
    %679 = vsyncpa [#allocation3], 1
    %s680 = scalar_lea.sflag [#allocation3], 1
    %681 = vsyncpa %s680, 1

</llo_original>
